<compile_context>
chip_gen: v7x
topology: tpu7x:2x2x1
jax: 0.10.0
libtpu: 0.0.40
codegen_flags: <defaults>
</compile_context>

<pallas_src>
import math
import functools

import jax
import jax.numpy as jnp
from jax.experimental import pallas as pl
from jax.experimental.pallas import tpu as pltpu

OMEGA = 10.0
EPSILON = 2.0
_INV_EPS = 1.0 / EPSILON
_C = OMEGA - OMEGA * math.log(1.0 + OMEGA / EPSILON)

_LANES = 128
_CHUNK_ROWS_F32 = 256      # 128 KiB per f32 operand per inner chunk
_BLOCK_ROWS_F32 = 8192     # 4 MiB per f32 operand per grid step
_VMEM_LIMIT_BYTES = 32 * 1024 * 1024
_MIN_PALLAS_NUMEL = 64 * 1024   # below this the plain fused XLA path is faster


def _round_up(x, m):
    return ((x + m - 1) // m) * m


def _tile_rows(rows, itemsize):
    """Pick (block_rows, chunk_rows) given the row count and input itemsize."""
    pack = max(1, 4 // itemsize)          # sublane packing factor (f32:1, bf16:2)
    sub = 8 * pack                        # rows per native sublane tile
    chunk = _CHUNK_ROWS_F32 * pack        # constant bytes per inner chunk
    desired = _BLOCK_ROWS_F32 * pack      # constant bytes per grid block (~4 MiB)
    if rows <= chunk:
        tm = _round_up(rows, sub)         # single small block
        chunk_rows = tm
    else:
        # >= 2 grid blocks when possible (v7x megacore); tm a multiple of chunk.
        tm = min(desired, _round_up(-(-rows // 2), chunk))
        chunk_rows = chunk
    return tm, chunk_rows


def _wing_elementwise(d):
    """Wing loss of a non-negative f32 distance array."""
    return jnp.where(d < OMEGA, OMEGA * jnp.log1p(d * _INV_EPS), d - _C)


def _wing_partial_kernel(pred_ref, targ_ref, out_ref, *, block_rows, chunk_rows,
                         total_rows):
    """Per-block wing-loss partial sum, written as an (8, 128) lane-dense tile."""
    nchunks = block_rows // chunk_rows
    ragged = (total_rows % block_rows) != 0
    block_start = pl.program_id(0) * block_rows

    if ragged:
        row_ids = jax.lax.broadcasted_iota(jnp.int32, (chunk_rows, _LANES), 0)

    def chunk_sum(c):
        if isinstance(c, int):
            off = c * chunk_rows
        else:
            off = pl.multiple_of(c * chunk_rows, chunk_rows)
        p = pred_ref[pl.ds(off, chunk_rows), :].astype(jnp.float32)
        t = targ_ref[pl.ds(off, chunk_rows), :].astype(jnp.float32)
        d = jnp.abs(t - p)
        loss = _wing_elementwise(d)
        if ragged:
            # Mask rows past the end of the real data (Pallas-padded garbage).
            valid = total_rows - block_start - off
            loss = jnp.where(row_ids < valid, loss, 0.0)
        # Fold sublane groups: (chunk_rows, 128) -> (chunk_rows//8, 8, 128) is a
        # tile-preserving split (free), then VPU adds down to one (8, 128) vreg.
        return loss.reshape(chunk_rows // 8, 8, _LANES).sum(axis=0)

    if nchunks == 1:
        acc = chunk_sum(0)
    else:
        acc = jax.lax.fori_loop(
            0, nchunks, lambda c, a: a + chunk_sum(c),
            jnp.zeros((8, _LANES), jnp.float32), unroll=True)

    out_ref[...] = acc[None, :, :]


@functools.partial(jax.jit, static_argnames=("force_pallas",))
def wing_loss(pred, target, *, force_pallas=False):
    assert pred.shape == target.shape
    numel = pred.size

    # Small-input fallback: dispatch + pipeline prologue dwarfs the HBM traffic.
    if numel < _MIN_PALLAS_NUMEL and not force_pallas:
        d = jnp.abs(target.astype(jnp.float32) - pred.astype(jnp.float32))
        return (jnp.sum(_wing_elementwise(d)) / jnp.float32(numel)).astype(jnp.float32)

    p = pred.reshape(-1)
    t = target.reshape(-1)

    pad = (-numel) % _LANES
    if pad:
        # Zero-padding BOTH operands gives d = 0 -> loss contribution exactly 0,
        # so no tail path / per-lane mask is needed.
        # TODO(synk): this pad materializes one HBM copy of each input when
        # numel % 128 != 0; CompilerParams(allow_input_fusion=...) could fuse it
        # into the pallas_call operands and remove the extra traffic.
        p = jnp.pad(p, (0, pad))
        t = jnp.pad(t, (0, pad))

    rows = (numel + pad) // _LANES
    p2 = p.reshape(rows, _LANES)   # original dtype preserved through the DMA
    t2 = t.reshape(rows, _LANES)

    itemsize = max(p2.dtype.itemsize, t2.dtype.itemsize)
    tm, chunk_rows = _tile_rows(rows, itemsize)
    nblocks = pl.cdiv(rows, tm)

    kernel = functools.partial(
        _wing_partial_kernel, block_rows=tm, chunk_rows=chunk_rows, total_rows=rows)

    partials = pl.pallas_call(
        kernel,
        out_shape=jax.ShapeDtypeStruct((nblocks, 8, _LANES), jnp.float32),
        grid_spec=pltpu.PrefetchScalarGridSpec(
            num_scalar_prefetch=0,
            grid=(nblocks,),
            in_specs=[
                pl.BlockSpec((tm, _LANES), lambda i: (i, 0)),
                pl.BlockSpec((tm, _LANES), lambda i: (i, 0)),
            ],
            out_specs=pl.BlockSpec((1, 8, _LANES), lambda i: (i, 0, 0)),
        ),
        compiler_params=pltpu.CompilerParams(
            dimension_semantics=("parallel",),        # no grid-carried state
            vmem_limit_bytes=_VMEM_LIMIT_BYTES,       # 16 MiB double-buffered inputs
        ),
        cost_estimate=pl.CostEstimate(
            flops=6 * numel,
            transcendentals=numel,
            bytes_accessed=(p2.size * p2.dtype.itemsize
                            + t2.size * t2.dtype.itemsize
                            + nblocks * 8 * _LANES * 4),
        ),
    )(p2, t2)

    return (jnp.sum(partials) / jnp.float32(numel)).astype(jnp.float32)


def _wing_loss_ref(pred, target):
    d = jnp.abs(target.astype(jnp.float32) - pred.astype(jnp.float32))
    loss = jnp.where(d < OMEGA, OMEGA * jnp.log1p(d / EPSILON), d - _C)
    return jnp.sum(loss) / d.size


if __name__ == "__main__":
    key = jax.random.PRNGKey(0)
    k1, k2 = jax.random.split(key)

    # 1) Small shape consistent with landmark-style regression; force the
    #    Pallas path so the kernel itself is exercised.
    shape = (2, 4, 16, 16)
    pred = jax.random.normal(k1, shape, dtype=jnp.float32) * 8.0
    target = jax.random.normal(k2, shape, dtype=jnp.float32) * 8.0
    out = wing_loss(pred, target, force_pallas=True)
    jax.block_until_ready(out)
    ref = _wing_loss_ref(pred, target)
    assert jnp.allclose(out, ref, rtol=1e-5, atol=1e-5), (out, ref)

    # 2) Ragged size (numel % 128 != 0, rows % block != 0): exercises the
    #    zero-pad path and the in-kernel last-block mask.
    shape2 = (3, 5, 7, 53)
    p_r = jax.random.normal(k1, shape2, dtype=jnp.float32) * 8.0
    t_r = jax.random.normal(k2, shape2, dtype=jnp.float32) * 8.0
    out2 = wing_loss(p_r, t_r, force_pallas=True)
    jax.block_until_ready(out2)
    ref2 = _wing_loss_ref(p_r, t_r)
    assert jnp.allclose(out2, ref2, rtol=1e-5, atol=1e-5), (out2, ref2)

    # 3) Larger aligned size: exercises the multi-block grid and the chunked
    #    fori_loop accumulation through the default (non-forced) path.
    shape3 = (8, 4, 64, 64)
    p_b = jax.random.normal(k1, shape3, dtype=jnp.float32) * 8.0
    t_b = jax.random.normal(k2, shape3, dtype=jnp.float32) * 8.0
    out3 = wing_loss(p_b, t_b)
    jax.block_until_ready(out3)
    ref3 = _wing_loss_ref(p_b, t_b)
    assert jnp.allclose(out3, ref3, rtol=1e-5, atol=1e-5), (out3, ref3)

    print("KERNEL_OK")
</pallas_src>

<mosaic_0001>
module attributes {stable_mosaic.version = 11 : i64} {
  func.func @_wing_partial_kernel(%arg0: i32, %arg1: memref<16x128xf32, #tpu.memory_space<vmem>>, %arg2: memref<16x128xf32, #tpu.memory_space<vmem>>, %arg3: memref<1x8x128xf32, #tpu.memory_space<vmem>>) attributes {dimension_semantics = [#tpu.dimension_semantics<parallel>], iteration_bounds = array<i64: 1>, scalar_prefetch = 0 : i64, scratch_operands = 0 : i64, tpu.core_type = #tpu.core_type<tc>, window_params = [{transform_indices = @transform_0, window_bounds = array<i64: 16, 128>}, {transform_indices = @transform_1, window_bounds = array<i64: 16, 128>}, {transform_indices = @transform_2, window_bounds = array<i64: 1, 8, 128>}]} {
    %c0 = arith.constant 0 : index
    %c0_0 = arith.constant 0 : index
    %0 = vector.load %arg1[%c0, %c0_0] : memref<16x128xf32, #tpu.memory_space<vmem>>, vector<16x128xf32>
    %c0_1 = arith.constant 0 : index
    %c0_2 = arith.constant 0 : index
    %1 = vector.load %arg2[%c0_1, %c0_2] : memref<16x128xf32, #tpu.memory_space<vmem>>, vector<16x128xf32>
    %2 = arith.subf %1, %0 : vector<16x128xf32>
    %3 = math.absf %2 : vector<16x128xf32>
    %cst = arith.constant 1.000000e+01 : f32
    %4 = vector.broadcast %cst : f32 to vector<16x128xf32>
    %5 = arith.cmpf olt, %3, %4 : vector<16x128xf32>
    %cst_3 = arith.constant 5.000000e-01 : f32
    %6 = vector.broadcast %cst_3 : f32 to vector<16x128xf32>
    %7 = arith.mulf %3, %6 : vector<16x128xf32>
    %8 = math.log1p %7 : vector<16x128xf32>
    %cst_4 = arith.constant 1.000000e+01 : f32
    %9 = vector.broadcast %cst_4 : f32 to vector<16x128xf32>
    %10 = arith.mulf %9, %8 : vector<16x128xf32>
    %cst_5 = arith.constant -7.9175949 : f32
    %11 = vector.broadcast %cst_5 : f32 to vector<16x128xf32>
    %12 = arith.subf %3, %11 : vector<16x128xf32>
    %13 = arith.select %5, %10, %12 : vector<16x128xi1>, vector<16x128xf32>
    %14 = vector.shape_cast %13 : vector<16x128xf32> to vector<2x8x128xf32>
    %cst_6 = arith.constant dense<0.000000e+00> : vector<8x128xf32>
    %15 = vector.multi_reduction <add>, %14, %cst_6 [0] : vector<2x8x128xf32> to vector<8x128xf32>
    %16 = vector.shape_cast %15 : vector<8x128xf32> to vector<1x8x128xf32>
    %c0_7 = arith.constant 0 : index
    %c0_8 = arith.constant 0 : index
    %c0_9 = arith.constant 0 : index
    %17 = vector.load %arg3[%c0_7, %c0_8, %c0_9] : memref<1x8x128xf32, #tpu.memory_space<vmem>>, vector<1x8x128xf32>
    tpu.vector_store %arg3[%c0_7, %c0_8, %c0_9], %16 {strides = array<i32>} : memref<1x8x128xf32, #tpu.memory_space<vmem>>, vector<1x8x128xf32>,
    return
  }
  func.func @transform_0(%arg0: i32) -> (i32, i32) {
    %c0_i32 = arith.constant 0 : i32
    %c0_i32_0 = arith.constant 0 : i32
    return %arg0, %c0_i32 : i32, i32
  }
  func.func @transform_1(%arg0: i32) -> (i32, i32) {
    %c0_i32 = arith.constant 0 : i32
    %c0_i32_0 = arith.constant 0 : i32
    return %arg0, %c0_i32 : i32, i32
  }
  func.func @transform_2(%arg0: i32) -> (i32, i32, i32) {
    %c0_i32 = arith.constant 0 : i32
    %c0_i32_0 = arith.constant 0 : i32
    %c0_i32_1 = arith.constant 0 : i32
    return %arg0, %c0_i32, %c0_i32_0 : i32, i32, i32
  }
}

</mosaic_0001>

<llo_original>
// kernel: wing_loss.1
$region0: #{wing_loss.1}
  #allocation0 [shape = 'u32[]', space=smem, size = 0x4, offset = 0x4, fixed_abs, tag = 'smem constant byte address 0x4 - core index']
  #allocation1 [shape = 'u32[144,128]{1,0:T(1,128)}', space=vmem, size = 0x12000, scoped, tag = 'internal scratch']
  %s0 = inlined_call_operand.vmem [shape: f32[16,128], index: 0, kind: input, shape index: {}]
  %s1 = inlined_call_operand.vmem [shape: f32[16,128], index: 1, kind: input, shape index: {}]
  %s2 = inlined_call_operand.vmem [shape: f32[1,8,128], index: 2, kind: output, shape index: {}]
  %s3 = sld [smem:[#allocation0]]
  $region18: #{wing_loss.1} parent=0
    _
  %s5 = ssub.s32 1, %s3
  %s6 = scalar_select 0, %s5, %s3
  // Predicated region
  $region2: #{wing_loss.1} parent=0 // pred_check
    _
  $region3: #{wing_loss.1} parent=0 // pred_check_branch
    %8 = sbr.rel (0) target = $region5
  $region4: #{wing_loss.1} parent=0 // pred_region
    _
  $region5: #{wing_loss.1} parent=0 // pred_fallthru
    _
  // Predicated region
  $region6: #{wing_loss.1} parent=0 // pred_check
    _
  $region7: #{wing_loss.1} parent=0 // pred_check_branch
    %10 = sbr.rel (0) target = $region9
  $region8: #{wing_loss.1} parent=0 // pred_region
    _
  $region9: #{wing_loss.1} parent=0 // pred_fallthru
    _
  %v11 = vld [vmem:[%s0] sm:$0xff]
  %v12 = vld [vmem:[%s0 + $0x8] sm:$0xff]
  %v13 = vld [vmem:[%s1] sm:$0xff]
  %v14 = vld [vmem:[%s1 + $0x8] sm:$0xff]
  %v15 = vsub.f32 %v13, %v11
  %v16 = vsub.f32 %v14, %v12
  %v17 = vand.u32 2147483647, %v15
  %v18 = vand.u32 2147483647, %v16
  %vm19 = vcmp.lt.f32.partialorder %v17, 10.0
  %vm20 = vcmp.lt.f32.partialorder %v18, 10.0
  %v21 = vmul.f32 %v17, 0.5
  %v22 = vmul.f32 %v18, 0.5
  %v23 = vadd.f32 %v21, 1.0
  %v24 = vlog2.pop %v23
  %v25 = vmul.f32 %v24, 0.6931472
  %v26 = vmul.f32 -0.5, %v21
  %v27 = vadd.f32 %v26, 1.0
  %v28 = vmul.f32 %v27, %v21
  %v29 = vand.u32 2147483647, %v21
  %vm30 = vcmp.lt.f32.partialorder %v29, 0.0004427343
  %v31 = vsel %vm30, %v28, %v25
  %v32 = vadd.f32 %v22, 1.0
  %v33 = vlog2.pop %v32
  %v34 = vmul.f32 %v33, 0.6931472
  %v35 = vmul.f32 -0.5, %v22
  %v36 = vadd.f32 %v35, 1.0
  %v37 = vmul.f32 %v36, %v22
  %v38 = vand.u32 2147483647, %v22
  %vm39 = vcmp.lt.f32.partialorder %v38, 0.0004427343
  %v40 = vsel %vm39, %v37, %v34
  %v41 = vmul.f32 %v31, 10.0
  %v42 = vmul.f32 %v40, 10.0
  %v43 = vsub.f32 %v17, -7.917595
  %v44 = vsub.f32 %v18, -7.917595
  %v45 = vsel %vm19, %v41, %v43
  %v46 = vsel %vm20, %v42, %v44
  %v47 = vadd.f32 %v45, %v46
  %48 = vst [vmem:[%s2] sm:$0xff] %v47
  // Predicated region
  $region10: #{wing_loss.1} parent=0 // pred_check
    _
  $region11: #{wing_loss.1} parent=0 // pred_check_branch
    %50 = sbr.rel (0) target = $region13
  $region12: #{wing_loss.1} parent=0 // pred_region
    _
  $region13: #{wing_loss.1} parent=0 // pred_fallthru
    _
  // Predicated region
  $region14: #{wing_loss.1} parent=0 // pred_check
    _
  $region15: #{wing_loss.1} parent=0 // pred_check_branch
    %52 = sbr.rel (0) target = $region17
  $region16: #{wing_loss.1} parent=0 // pred_region
    _
  $region17: #{wing_loss.1} parent=0 // pred_fallthru
    _

</llo_original>
